<compile_context>
chip_gen: v7x
topology: tpu7x:2x2x1
jax: 0.10.0
libtpu: 0.0.40
codegen_flags: <defaults>
</compile_context>

<pallas_src>
import jax
import jax.numpy as jnp
from jax import lax
from jax.experimental import pallas as pl
from jax.experimental.pallas import tpu as pltpu

SCALE = 2048.0 ** (-0.5)   # module hardcodes 2048**-0.5, independent of dim
LN_EPS = 1e-5


def _layernorm(v, gamma, beta):
    mu = jnp.mean(v, axis=-1, keepdims=True)
    var = jnp.mean((v - mu) ** 2, axis=-1, keepdims=True)
    return (v - mu) * lax.rsqrt(var + LN_EPS) * gamma + beta


# --------------------- pass 1: LayerNorms + projections ---------------------
def _project_kernel(x_ref, g_ref, xm_ref, wqt_ref, wgt_ref,
                    gx_ref, bx_ref, gg_ref, bg_ref,
                    qn_ref, relq_ref, gn_ref, relg_ref):
    x = x_ref[0].astype(jnp.float32)              # (tp, D)
    g = g_ref[0].astype(jnp.float32)              # (tp, D)
    xm = xm_ref[0].astype(jnp.float32)            # (1, D) sequence mean of x

    qn = _layernorm(x, gx_ref[...], bx_ref[...])              # f32
    gn = _layernorm(g - xm, gg_ref[...], bg_ref[...])         # f32

    qn_bf = qn.astype(jnp.bfloat16)
    gn_bf = gn.astype(jnp.bfloat16)

    # Weights arrive pre-transposed (and bf16), so this is q @ Wq^T / g @ Wg^T.
    relq = jnp.dot(qn_bf, wqt_ref[...], preferred_element_type=jnp.float32)
    relg = jnp.dot(gn_bf, wgt_ref[...], preferred_element_type=jnp.float32)

    qn_ref[0] = qn.astype(qn_ref.dtype)
    gn_ref[0] = gn_bf
    relq_ref[0] = relq.astype(jnp.bfloat16)
    relg_ref[0] = relg.astype(jnp.bfloat16)


# --------------- pass 2: flash-style attention (online softmax) -------------
def _attn_kernel(qn_ref, relq_ref, relg_ref, gn_ref, o_ref,
                 m_scr, l_scr, acc_scr):
    ki = pl.program_id(2)

    @pl.when(ki == 0)
    def _():
        m_scr[...] = jnp.full_like(m_scr, -jnp.inf)
        l_scr[...] = jnp.zeros_like(l_scr)
        acc_scr[...] = jnp.zeros_like(acc_scr)

    relq = relq_ref[0]          # (tq, D) bf16
    relg = relg_ref[0]          # (tk, D) bf16
    gn = gn_ref[0]              # (tk, D) bf16

    # scores: contract last dims directly (no materialized transpose).
    s = lax.dot_general(relq, relg,
                        dimension_numbers=(((1,), (1,)), ((), ())),
                        preferred_element_type=jnp.float32) * SCALE   # (tq, tk)

    m_prev = m_scr[...]
    m_new = jnp.maximum(m_prev, jnp.max(s, axis=-1, keepdims=True))
    alpha = jnp.exp(m_prev - m_new)
    p = jnp.exp(s - m_new)
    l_scr[...] = alpha * l_scr[...] + jnp.sum(p, axis=-1, keepdims=True)
    acc_scr[...] = alpha * acc_scr[...] + jnp.dot(
        p.astype(jnp.bfloat16), gn, preferred_element_type=jnp.float32)
    m_scr[...] = m_new

    @pl.when(ki == pl.num_programs(2) - 1)
    def _():
        inv_l = pl.reciprocal(l_scr[...], approx=True)      # EUP, ~free
        out = qn_ref[0].astype(jnp.float32) + acc_scr[...] * inv_l
        o_ref[0] = out.astype(o_ref.dtype)


def _pick_tile(n, preferred):
    for t in preferred:
        if t <= n and n % t == 0:
            return t
    return n


def deltaor_pallas(x, g, wq, wg, gamma_x, beta_x, gamma_g, beta_g,
                   *, block_p=None, block_q=None, block_k=None):
    B, N, D = x.shape
    dtype = x.dtype

    tp = block_p or _pick_tile(N, (256, 128, 64, 32, 16, 8))
    tq = block_q or _pick_tile(N, (256, 128, 64, 32, 16, 8))
    tk = block_k or _pick_tile(N, (512, 256, 128, 64, 32, 16, 8))
    assert N % tp == 0 and N % tq == 0 and N % tk == 0

    # Pre-transposed bf16 weights: kernel contracts without any .T / XLU work.
    wq_t = wq.T.astype(jnp.bfloat16)
    wg_t = wg.T.astype(jnp.bfloat16)
    gx = gamma_x.reshape(1, D).astype(jnp.float32)
    bx = beta_x.reshape(1, D).astype(jnp.float32)
    gg = gamma_g.reshape(1, D).astype(jnp.float32)
    bg = beta_g.reshape(1, D).astype(jnp.float32)

    # Sequence-mean pre-pass (needs full N; hoisted out of the tiled kernels).
    x_mean = jnp.mean(x.astype(jnp.float32), axis=1, keepdims=True)  # (B,1,D)

    vmem_limit = 64 * 1024 * 1024

    # ------------------------------ pass 1 ---------------------------------
    row_blk = pl.BlockSpec((1, tp, D), lambda b, i: (b, i, 0))
    vec_blk = pl.BlockSpec((1, D), lambda b, i: (0, 0))
    proj_cost = pl.CostEstimate(
        flops=int(4 * B * N * D * D),
        transcendentals=0,
        bytes_accessed=int(B * N * D * (4 + 4) + 2 * D * D * 2
                           + B * N * D * (4 + 2 + 2 + 2)),
    )
    qn, relq, gn, relg = pl.pallas_call(
        _project_kernel,
        out_shape=(jax.ShapeDtypeStruct((B, N, D), dtype),
                   jax.ShapeDtypeStruct((B, N, D), jnp.bfloat16),
                   jax.ShapeDtypeStruct((B, N, D), jnp.bfloat16),
                   jax.ShapeDtypeStruct((B, N, D), jnp.bfloat16)),
        grid_spec=pltpu.PrefetchScalarGridSpec(
            num_scalar_prefetch=0,
            grid=(B, N // tp),
            in_specs=[row_blk, row_blk,
                      pl.BlockSpec((1, 1, D), lambda b, i: (b, 0, 0)),
                      pl.BlockSpec((D, D), lambda b, i: (0, 0)),
                      pl.BlockSpec((D, D), lambda b, i: (0, 0)),
                      vec_blk, vec_blk, vec_blk, vec_blk],
            out_specs=[row_blk, row_blk, row_blk, row_blk],
        ),
        compiler_params=pltpu.CompilerParams(
            dimension_semantics=("parallel", "parallel"),
            vmem_limit_bytes=vmem_limit),
        cost_estimate=proj_cost,
    )(x, g, x_mean, wq_t, wg_t, gx, bx, gg, bg)

    # ------------------------------ pass 2 ---------------------------------
    q_blk = pl.BlockSpec((1, tq, D), lambda b, qi, ki: (b, qi, 0))
    k_blk = pl.BlockSpec((1, tk, D), lambda b, qi, ki: (b, ki, 0))
    attn_cost = pl.CostEstimate(
        flops=int(4 * B * N * N * D),
        transcendentals=int(B * N * N),
        bytes_accessed=int(B * N * D * (4 + 2 + 2 + 2) + B * N * D * 4),
    )
    out = pl.pallas_call(
        _attn_kernel,
        out_shape=jax.ShapeDtypeStruct((B, N, D), dtype),
        grid_spec=pltpu.PrefetchScalarGridSpec(
            num_scalar_prefetch=0,
            grid=(B, N // tq, N // tk),
            in_specs=[q_blk, q_blk, k_blk, k_blk],
            out_specs=q_blk,
            scratch_shapes=[pltpu.VMEM((tq, 1), jnp.float32),
                            pltpu.VMEM((tq, 1), jnp.float32),
                            pltpu.VMEM((tq, D), jnp.float32)],
        ),
        compiler_params=pltpu.CompilerParams(
            dimension_semantics=("parallel", "parallel", "arbitrary"),
            vmem_limit_bytes=vmem_limit),
        cost_estimate=attn_cost,
    )(qn, relq, relg, gn)
    return out


def deltaor_ref(x, g, wq, wg, gamma_x, beta_x, gamma_g, beta_g):
    """Pure-JAX reference mirroring the PyTorch forward."""
    def ln(v, gamma, beta):
        mu = jnp.mean(v, axis=-1, keepdims=True)
        var = jnp.mean((v - mu) ** 2, axis=-1, keepdims=True)
        return (v - mu) * jax.lax.rsqrt(var + LN_EPS) * gamma + beta

    q = ln(x, gamma_x, beta_x)
    rel_q = q @ wq.T
    g2 = g - jnp.mean(x, axis=1, keepdims=True)
    gn = ln(g2, gamma_g, beta_g)
    rel_g = gn @ wg.T
    rel = jnp.einsum("bnd,bmd->bnm", rel_q, rel_g) * SCALE
    rel = jax.nn.softmax(rel, axis=-1)
    return q + jnp.einsum("bnm,bmd->bnd", rel, gn)


if __name__ == "__main__":
    B, N, D = 2, 32, 128   # small but lane-dense (D multiple of 128)
    key = jax.random.PRNGKey(0)
    kx, kg, kwq, kwg = jax.random.split(key, 4)

    x = jax.random.normal(kx, (B, N, D), dtype=jnp.float32)
    g = jax.random.normal(kg, (B, N, D), dtype=jnp.float32)

    # nn.Linear-style uniform init, LayerNorm defaults.
    bound = 1.0 / (D ** 0.5)
    wq = jax.random.uniform(kwq, (D, D), jnp.float32, -bound, bound)
    wg = jax.random.uniform(kwg, (D, D), jnp.float32, -bound, bound)
    gamma_x = jnp.ones((D,), jnp.float32)
    beta_x = jnp.zeros((D,), jnp.float32)
    gamma_g = jnp.ones((D,), jnp.float32)
    beta_g = jnp.zeros((D,), jnp.float32)

    # Small tiles so the multi-tile online-softmax path is actually exercised.
    out = deltaor_pallas(x, g, wq, wg, gamma_x, beta_x, gamma_g, beta_g,
                         block_p=8, block_q=8, block_k=8)
    out = jax.block_until_ready(out)

    ref = deltaor_ref(x, g, wq, wg, gamma_x, beta_x, gamma_g, beta_g)
    err = float(jnp.max(jnp.abs(out - ref)))
    assert err < 3e-2, f"mismatch vs reference: max abs err {err}"

    print("KERNEL_OK")
</pallas_src>

<mosaic_0001>
module attributes {stable_mosaic.version = 11 : i64} {
  func.func @_project_kernel(%arg0: i32, %arg1: i32, %arg2: memref<1x8x128xf32, #tpu.memory_space<vmem>>, %arg3: memref<1x8x128xf32, #tpu.memory_space<vmem>>, %arg4: memref<1x1x128xf32, #tpu.memory_space<vmem>>, %arg5: memref<128x128xbf16, #tpu.memory_space<vmem>>, %arg6: memref<128x128xbf16, #tpu.memory_space<vmem>>, %arg7: memref<1x128xf32, #tpu.memory_space<vmem>>, %arg8: memref<1x128xf32, #tpu.memory_space<vmem>>, %arg9: memref<1x128xf32, #tpu.memory_space<vmem>>, %arg10: memref<1x128xf32, #tpu.memory_space<vmem>>, %arg11: memref<1x8x128xf32, #tpu.memory_space<vmem>>, %arg12: memref<1x8x128xbf16, #tpu.memory_space<vmem>>, %arg13: memref<1x8x128xbf16, #tpu.memory_space<vmem>>, %arg14: memref<1x8x128xbf16, #tpu.memory_space<vmem>>) attributes {dimension_semantics = [#tpu.dimension_semantics<parallel>, #tpu.dimension_semantics<parallel>], iteration_bounds = array<i64: 2, 4>, scalar_prefetch = 0 : i64, scratch_operands = 0 : i64, tpu.core_type = #tpu.core_type<tc>, window_params = [{transform_indices = @transform_0, window_bounds = array<i64: 1, 8, 128>}, {transform_indices = @transform_1, window_bounds = array<i64: 1, 8, 128>}, {transform_indices = @transform_2, window_bounds = array<i64: 1, 1, 128>}, {pipeline_mode = #tpu.pipeline_mode<synchronous>, transform_indices = @transform_3, window_bounds = array<i64: 128, 128>}, {pipeline_mode = #tpu.pipeline_mode<synchronous>, transform_indices = @transform_4, window_bounds = array<i64: 128, 128>}, {pipeline_mode = #tpu.pipeline_mode<synchronous>, transform_indices = @transform_5, window_bounds = array<i64: 1, 128>}, {pipeline_mode = #tpu.pipeline_mode<synchronous>, transform_indices = @transform_6, window_bounds = array<i64: 1, 128>}, {pipeline_mode = #tpu.pipeline_mode<synchronous>, transform_indices = @transform_7, window_bounds = array<i64: 1, 128>}, {pipeline_mode = #tpu.pipeline_mode<synchronous>, transform_indices = @transform_8, window_bounds = array<i64: 1, 128>}, {transform_indices = @transform_9, window_bounds = array<i64: 1, 8, 128>}, {transform_indices = @transform_10, window_bounds = array<i64: 1, 8, 128>}, {transform_indices = @transform_11, window_bounds = array<i64: 1, 8, 128>}, {transform_indices = @transform_12, window_bounds = array<i64: 1, 8, 128>}]} {
    %c0 = arith.constant 0 : index
    %c0_0 = arith.constant 0 : index
    %c0_1 = arith.constant 0 : index
    %0 = vector.load %arg2[%c0, %c0_0, %c0_1] : memref<1x8x128xf32, #tpu.memory_space<vmem>>, vector<1x8x128xf32>
    %1 = vector.shape_cast %0 : vector<1x8x128xf32> to vector<8x128xf32>
    %c0_2 = arith.constant 0 : index
    %c0_3 = arith.constant 0 : index
    %c0_4 = arith.constant 0 : index
    %2 = vector.load %arg3[%c0_2, %c0_3, %c0_4] : memref<1x8x128xf32, #tpu.memory_space<vmem>>, vector<1x8x128xf32>
    %3 = vector.shape_cast %2 : vector<1x8x128xf32> to vector<8x128xf32>
    %c0_5 = arith.constant 0 : index
    %c0_6 = arith.constant 0 : index
    %c0_7 = arith.constant 0 : index
    %4 = vector.load %arg4[%c0_5, %c0_6, %c0_7] : memref<1x1x128xf32, #tpu.memory_space<vmem>>, vector<1x1x128xf32>
    %5 = vector.shape_cast %4 : vector<1x1x128xf32> to vector<1x128xf32>
    %c0_8 = arith.constant 0 : index
    %c0_9 = arith.constant 0 : index
    %6 = vector.load %arg7[%c0_8, %c0_9] : memref<1x128xf32, #tpu.memory_space<vmem>>, vector<1x128xf32>
    %c0_10 = arith.constant 0 : index
    %c0_11 = arith.constant 0 : index
    %7 = vector.load %arg8[%c0_10, %c0_11] : memref<1x128xf32, #tpu.memory_space<vmem>>, vector<1x128xf32>
    %cst = arith.constant dense<0.000000e+00> : vector<8xf32>
    %8 = vector.multi_reduction <add>, %1, %cst [1] : vector<8x128xf32> to vector<8xf32>
    %9 = vector.shape_cast %8 : vector<8xf32> to vector<8x1xf32>
    %cst_12 = arith.constant 1.280000e+02 : f32
    %10 = vector.broadcast %cst_12 : f32 to vector<8x1xf32>
    %11 = arith.divf %9, %10 : vector<8x1xf32>
    %12 = vector.broadcast %11 : vector<8x1xf32> to vector<8x128xf32>
    %13 = arith.subf %1, %12 : vector<8x128xf32>
    %14 = arith.mulf %13, %13 : vector<8x128xf32>
    %cst_13 = arith.constant dense<0.000000e+00> : vector<8xf32>
    %15 = vector.multi_reduction <add>, %14, %cst_13 [1] : vector<8x128xf32> to vector<8xf32>
    %16 = vector.shape_cast %15 : vector<8xf32> to vector<8x1xf32>
    %cst_14 = arith.constant 1.280000e+02 : f32
    %17 = vector.broadcast %cst_14 : f32 to vector<8x1xf32>
    %18 = arith.divf %16, %17 : vector<8x1xf32>
    %19 = vector.broadcast %11 : vector<8x1xf32> to vector<8x128xf32>
    %20 = arith.subf %1, %19 : vector<8x128xf32>
    %cst_15 = arith.constant 9.99999974E-6 : f32
    %21 = vector.broadcast %cst_15 : f32 to vector<8x1xf32>
    %22 = arith.addf %18, %21 : vector<8x1xf32>
    %23 = math.rsqrt %22 : vector<8x1xf32>
    %24 = vector.broadcast %23 : vector<8x1xf32> to vector<8x128xf32>
    %25 = arith.mulf %20, %24 : vector<8x128xf32>
    %26 = vector.broadcast %6 : vector<1x128xf32> to vector<8x128xf32>
    %27 = arith.mulf %25, %26 : vector<8x128xf32>
    %28 = vector.broadcast %7 : vector<1x128xf32> to vector<8x128xf32>
    %29 = arith.addf %27, %28 : vector<8x128xf32>
    %30 = vector.broadcast %5 : vector<1x128xf32> to vector<8x128xf32>
    %31 = arith.subf %3, %30 : vector<8x128xf32>
    %c0_16 = arith.constant 0 : index
    %c0_17 = arith.constant 0 : index
    %32 = vector.load %arg9[%c0_16, %c0_17] : memref<1x128xf32, #tpu.memory_space<vmem>>, vector<1x128xf32>
    %c0_18 = arith.constant 0 : index
    %c0_19 = arith.constant 0 : index
    %33 = vector.load %arg10[%c0_18, %c0_19] : memref<1x128xf32, #tpu.memory_space<vmem>>, vector<1x128xf32>
    %cst_20 = arith.constant dense<0.000000e+00> : vector<8xf32>
    %34 = vector.multi_reduction <add>, %31, %cst_20 [1] : vector<8x128xf32> to vector<8xf32>
    %35 = vector.shape_cast %34 : vector<8xf32> to vector<8x1xf32>
    %cst_21 = arith.constant 1.280000e+02 : f32
    %36 = vector.broadcast %cst_21 : f32 to vector<8x1xf32>
    %37 = arith.divf %35, %36 : vector<8x1xf32>
    %38 = vector.broadcast %37 : vector<8x1xf32> to vector<8x128xf32>
    %39 = arith.subf %31, %38 : vector<8x128xf32>
    %40 = arith.mulf %39, %39 : vector<8x128xf32>
    %cst_22 = arith.constant dense<0.000000e+00> : vector<8xf32>
    %41 = vector.multi_reduction <add>, %40, %cst_22 [1] : vector<8x128xf32> to vector<8xf32>
    %42 = vector.shape_cast %41 : vector<8xf32> to vector<8x1xf32>
    %cst_23 = arith.constant 1.280000e+02 : f32
    %43 = vector.broadcast %cst_23 : f32 to vector<8x1xf32>
    %44 = arith.divf %42, %43 : vector<8x1xf32>
    %45 = vector.broadcast %37 : vector<8x1xf32> to vector<8x128xf32>
    %46 = arith.subf %31, %45 : vector<8x128xf32>
    %cst_24 = arith.constant 9.99999974E-6 : f32
    %47 = vector.broadcast %cst_24 : f32 to vector<8x1xf32>
    %48 = arith.addf %44, %47 : vector<8x1xf32>
    %49 = math.rsqrt %48 : vector<8x1xf32>
    %50 = vector.broadcast %49 : vector<8x1xf32> to vector<8x128xf32>
    %51 = arith.mulf %46, %50 : vector<8x128xf32>
    %52 = vector.broadcast %32 : vector<1x128xf32> to vector<8x128xf32>
    %53 = arith.mulf %51, %52 : vector<8x128xf32>
    %54 = vector.broadcast %33 : vector<1x128xf32> to vector<8x128xf32>
    %55 = arith.addf %53, %54 : vector<8x128xf32>
    %56 = arith.truncf %29 : vector<8x128xf32> to vector<8x128xbf16>
    %57 = arith.truncf %55 : vector<8x128xf32> to vector<8x128xbf16>
    %c0_25 = arith.constant 0 : index
    %c0_26 = arith.constant 0 : index
    %58 = vector.load %arg5[%c0_25, %c0_26] : memref<128x128xbf16, #tpu.memory_space<vmem>>, vector<128x128xbf16>
    %cst_27 = arith.constant dense<0.000000e+00> : vector<8x128xf32>
    %59 = tpu.matmul %56, %58, %cst_27 {dimension_numbers = #tpu.dot_dimension_numbers<[1], [0], [0], [1], [0, 0, 1, 1], [], []>} : vector<8x128xbf16>, vector<128x128xbf16>, vector<8x128xf32> -> vector<8x128xf32>
    %c0_28 = arith.constant 0 : index
    %c0_29 = arith.constant 0 : index
    %60 = vector.load %arg6[%c0_28, %c0_29] : memref<128x128xbf16, #tpu.memory_space<vmem>>, vector<128x128xbf16>
    %cst_30 = arith.constant dense<0.000000e+00> : vector<8x128xf32>
    %61 = tpu.matmul %57, %60, %cst_30 {dimension_numbers = #tpu.dot_dimension_numbers<[1], [0], [0], [1], [0, 0, 1, 1], [], []>} : vector<8x128xbf16>, vector<128x128xbf16>, vector<8x128xf32> -> vector<8x128xf32>
    %c0_31 = arith.constant 0 : index
    %c0_32 = arith.constant 0 : index
    %c0_33 = arith.constant 0 : index
    %62 = vector.load %arg11[%c0_31, %c0_32, %c0_33] : memref<1x8x128xf32, #tpu.memory_space<vmem>>, vector<1x8x128xf32>
    %63 = vector.shape_cast %62 : vector<1x8x128xf32> to vector<8x128xf32>
    %64 = vector.shape_cast %29 : vector<8x128xf32> to vector<1x8x128xf32>
    tpu.vector_store %arg11[%c0_31, %c0_32, %c0_33], %64 {strides = array<i32>} : memref<1x8x128xf32, #tpu.memory_space<vmem>>, vector<1x8x128xf32>,
    %c0_34 = arith.constant 0 : index
    %c0_35 = arith.constant 0 : index
    %c0_36 = arith.constant 0 : index
    %65 = vector.load %arg13[%c0_34, %c0_35, %c0_36] : memref<1x8x128xbf16, #tpu.memory_space<vmem>>, vector<1x8x128xbf16>
    %66 = vector.shape_cast %65 : vector<1x8x128xbf16> to vector<8x128xbf16>
    %67 = vector.shape_cast %57 : vector<8x128xbf16> to vector<1x8x128xbf16>
    tpu.vector_store %arg13[%c0_34, %c0_35, %c0_36], %67 {strides = array<i32>} : memref<1x8x128xbf16, #tpu.memory_space<vmem>>, vector<1x8x128xbf16>,
    %68 = arith.truncf %59 : vector<8x128xf32> to vector<8x128xbf16>
    %c0_37 = arith.constant 0 : index
    %c0_38 = arith.constant 0 : index
    %c0_39 = arith.constant 0 : index
    %69 = vector.load %arg12[%c0_37, %c0_38, %c0_39] : memref<1x8x128xbf16, #tpu.memory_space<vmem>>, vector<1x8x128xbf16>
    %70 = vector.shape_cast %69 : vector<1x8x128xbf16> to vector<8x128xbf16>
    %71 = vector.shape_cast %68 : vector<8x128xbf16> to vector<1x8x128xbf16>
    tpu.vector_store %arg12[%c0_37, %c0_38, %c0_39], %71 {strides = array<i32>} : memref<1x8x128xbf16, #tpu.memory_space<vmem>>, vector<1x8x128xbf16>,
    %72 = arith.truncf %61 : vector<8x128xf32> to vector<8x128xbf16>
    %c0_40 = arith.constant 0 : index
    %c0_41 = arith.constant 0 : index
    %c0_42 = arith.constant 0 : index
    %73 = vector.load %arg14[%c0_40, %c0_41, %c0_42] : memref<1x8x128xbf16, #tpu.memory_space<vmem>>, vector<1x8x128xbf16>
    %74 = vector.shape_cast %73 : vector<1x8x128xbf16> to vector<8x128xbf16>
    %75 = vector.shape_cast %72 : vector<8x128xbf16> to vector<1x8x128xbf16>
    tpu.vector_store %arg14[%c0_40, %c0_41, %c0_42], %75 {strides = array<i32>} : memref<1x8x128xbf16, #tpu.memory_space<vmem>>, vector<1x8x128xbf16>,
    return
  }
  func.func @transform_0(%arg0: i32, %arg1: i32) -> (i32, i32, i32) {
    %c0_i32 = arith.constant 0 : i32
    %c0_i32_0 = arith.constant 0 : i32
    return %arg0, %arg1, %c0_i32 : i32, i32, i32
  }
  func.func @transform_1(%arg0: i32, %arg1: i32) -> (i32, i32, i32) {
    %c0_i32 = arith.constant 0 : i32
    %c0_i32_0 = arith.constant 0 : i32
    return %arg0, %arg1, %c0_i32 : i32, i32, i32
  }
  func.func @transform_2(%arg0: i32, %arg1: i32) -> (i32, i32, i32) {
    %c0_i32 = arith.constant 0 : i32
    %c0_i32_0 = arith.constant 0 : i32
    %c0_i32_1 = arith.constant 0 : i32
    return %arg0, %c0_i32, %c0_i32_0 : i32, i32, i32
  }
  func.func @transform_3(%arg0: i32, %arg1: i32) -> (i32, i32) {
    %c0_i32 = arith.constant 0 : i32
    %c0_i32_0 = arith.constant 0 : i32
    %c0_i32_1 = arith.constant 0 : i32
    return %c0_i32, %c0_i32_0 : i32, i32
  }
  func.func @transform_4(%arg0: i32, %arg1: i32) -> (i32, i32) {
    %c0_i32 = arith.constant 0 : i32
    %c0_i32_0 = arith.constant 0 : i32
    %c0_i32_1 = arith.constant 0 : i32
    return %c0_i32, %c0_i32_0 : i32, i32
  }
  func.func @transform_5(%arg0: i32, %arg1: i32) -> (i32, i32) {
    %c0_i32 = arith.constant 0 : i32
    %c0_i32_0 = arith.constant 0 : i32
    %c0_i32_1 = arith.constant 0 : i32
    return %c0_i32, %c0_i32_0 : i32, i32
  }
  func.func @transform_6(%arg0: i32, %arg1: i32) -> (i32, i32) {
    %c0_i32 = arith.constant 0 : i32
    %c0_i32_0 = arith.constant 0 : i32
    %c0_i32_1 = arith.constant 0 : i32
    return %c0_i32, %c0_i32_0 : i32, i32
  }
  func.func @transform_7(%arg0: i32, %arg1: i32) -> (i32, i32) {
    %c0_i32 = arith.constant 0 : i32
    %c0_i32_0 = arith.constant 0 : i32
    %c0_i32_1 = arith.constant 0 : i32
    return %c0_i32, %c0_i32_0 : i32, i32
  }
  func.func @transform_8(%arg0: i32, %arg1: i32) -> (i32, i32) {
    %c0_i32 = arith.constant 0 : i32
    %c0_i32_0 = arith.constant 0 : i32
    %c0_i32_1 = arith.constant 0 : i32
    return %c0_i32, %c0_i32_0 : i32, i32
  }
  func.func @transform_9(%arg0: i32, %arg1: i32) -> (i32, i32, i32) {
    %c0_i32 = arith.constant 0 : i32
    %c0_i32_0 = arith.constant 0 : i32
    return %arg0, %arg1, %c0_i32 : i32, i32, i32
  }
  func.func @transform_10(%arg0: i32, %arg1: i32) -> (i32, i32, i32) {
    %c0_i32 = arith.constant 0 : i32
    %c0_i32_0 = arith.constant 0 : i32
    return %arg0, %arg1, %c0_i32 : i32, i32, i32
  }
  func.func @transform_11(%arg0: i32, %arg1: i32) -> (i32, i32, i32) {
    %c0_i32 = arith.constant 0 : i32
    %c0_i32_0 = arith.constant 0 : i32
    return %arg0, %arg1, %c0_i32 : i32, i32, i32
  }
  func.func @transform_12(%arg0: i32, %arg1: i32) -> (i32, i32, i32) {
    %c0_i32 = arith.constant 0 : i32
    %c0_i32_0 = arith.constant 0 : i32
    return %arg0, %arg1, %c0_i32 : i32, i32, i32
  }
}

</mosaic_0001>

<llo_original>
// kernel: tpu_custom_call.1
$region0: #{tpu_custom_call.1}
  #allocation0 [shape = 'u32[]', space=smem, size = 0x4, offset = 0x4, fixed_abs, tag = 'smem constant byte address 0x4 - core index']
  #allocation1 [shape = 'u32[144,128]{1,0:T(1,128)}', space=vmem, size = 0x12000, scoped, tag = 'internal scratch']
  %s0 = inlined_call_operand.hbm [shape: f32[2,32,128], index: 0, kind: input, shape index: {}]
  %s1 = inlined_call_operand.hbm [shape: f32[2,32,128], index: 1, kind: input, shape index: {}]
  %s2 = inlined_call_operand.hbm [shape: f32[2,1,128], index: 2, kind: input, shape index: {}]
  %s3 = inlined_call_operand.hbm [shape: bf16[128,128], index: 3, kind: input, shape index: {}]
  %s4 = inlined_call_operand.hbm [shape: bf16[128,128], index: 4, kind: input, shape index: {}]
  %s5 = inlined_call_operand.hbm [shape: f32[1,128], index: 5, kind: input, shape index: {}]
  %s6 = inlined_call_operand.hbm [shape: f32[1,128], index: 6, kind: input, shape index: {}]
  %s7 = inlined_call_operand.hbm [shape: f32[1,128], index: 7, kind: input, shape index: {}]
  %s8 = inlined_call_operand.hbm [shape: f32[1,128], index: 8, kind: input, shape index: {}]
  %s9 = inlined_call_operand.hbm [shape: f32[2,32,128], index: 9, kind: output, shape index: {0}]
  %s10 = inlined_call_operand.hbm [shape: bf16[2,32,128], index: 10, kind: output, shape index: {1}]
  %s11 = inlined_call_operand.hbm [shape: bf16[2,32,128], index: 11, kind: output, shape index: {2}]
  %s12 = inlined_call_operand.hbm [shape: bf16[2,32,128], index: 12, kind: output, shape index: {3}]
  %13 = xla_tuple %s9, %s10, %s11, %s12
  %s14 = sld [smem:[#allocation0]]
  $region129: #{tpu_custom_call.1} parent=0
    _
  %s16 = ssub.s32 1, %s14
  %s17 = scalar_select 0, %s16, %s14
  $region1: #{tpu_custom_call.1} parent=0
    #allocation2 [shape = 'u8[8192]{0}', space=vmem, size = 0x2000, scoped, tag = 'input window, operand 0']
    #allocation3 [shape = 's32[2]{0}', space=sflag, size = 0x8, scoped, tag = 'scoped memory for tpu_custom_call.1']
    #allocation4 [shape = 's32[2]{0}', space=sflag, size = 0x8, scoped, tag = 'scoped memory for tpu_custom_call.1']
    #allocation5 [shape = 'u8[8192]{0}', space=vmem, size = 0x2000, scoped, tag = 'input window, operand 1']
    #allocation6 [shape = 's32[2]{0}', space=sflag, size = 0x8, scoped, tag = 'scoped memory for tpu_custom_call.1']
    #allocation7 [shape = 'u8[1024]{0}', space=vmem, size = 0x400, scoped, tag = 'input window, operand 2']
    #allocation8 [shape = 'u8[32768]{0}', space=vmem, size = 0x8000, scoped, tag = 'input window, operand 3, single buffered']
    #allocation9 [shape = 's32[1]{0}', space=sflag, size = 0x4, scoped, tag = 'scoped memory for tpu_custom_call.1']
    #allocation10 [shape = 'u8[32768]{0}', space=vmem, size = 0x8000, scoped, tag = 'input window, operand 4, single buffered']
    #allocation11 [shape = 'u8[512]{0}', space=vmem, size = 0x400, scoped, tag = 'input window, operand 5, single buffered']
    #allocation12 [shape = 's32[1]{0}', space=sflag, size = 0x4, scoped, tag = 'scoped memory for tpu_custom_call.1']
    #allocation13 [shape = 'u8[512]{0}', space=vmem, size = 0x400, scoped, tag = 'input window, operand 6, single buffered']
    #allocation14 [shape = 'u8[512]{0}', space=vmem, size = 0x400, scoped, tag = 'input window, operand 7, single buffered']
    #allocation15 [shape = 's32[1]{0}', space=sflag, size = 0x4, scoped, tag = 'scoped memory for tpu_custom_call.1']
    #allocation16 [shape = 'u8[512]{0}', space=vmem, size = 0x400, scoped, tag = 'input window, operand 8, single buffered']
    #allocation17 [shape = 'u8[8192]{0}', space=vmem, size = 0x2000, scoped, tag = 'output window, operand 0']
    #allocation18 [shape = 'u8[4096]{0}', space=vmem, size = 0x1000, scoped, tag = 'output window, operand 1']
    #allocation19 [shape = 's32[2]{0}', space=sflag, size = 0x8, scoped, tag = 'scoped memory for tpu_custom_call.1']
    #allocation20 [shape = 'u8[4096]{0}', space=vmem, size = 0x1000, scoped, tag = 'output window, operand 2']
    #allocation21 [shape = 'u8[4096]{0}', space=vmem, size = 0x1000, scoped, tag = 'output window, operand 3']
    #allocation22 [shape = 's32[2]{0}', space=sflag, size = 0x8, scoped, tag = 'scoped memory for tpu_custom_call.1']
    %18 = vsyncpa [#allocation3], 0
    %s19 = scalar_lea.sflag [#allocation3], 1
    %20 = vsyncpa %s19, 0
    %21 = vsyncpa [#allocation6], 0
    %s22 = scalar_lea.sflag [#allocation6], 1
    %23 = vsyncpa %s22, 0
    %24 = vsyncpa [#allocation9], 0
    %25 = vsyncpa [#allocation12], 0
    %26 = vsyncpa [#allocation15], 0
    %27 = vsyncpa [#allocation4], 0
    %s28 = scalar_lea.sflag [#allocation4], 1
    %29 = vsyncpa %s28, 0
    %30 = vsyncpa [#allocation19], 0
    %s31 = scalar_lea.sflag [#allocation19], 1
    %32 = vsyncpa %s31, 0
    %33 = vsyncpa [#allocation22], 0
    %s34 = scalar_lea.sflag [#allocation22], 1
    %35 = vsyncpa %s34, 0
    loop: start=0, step=1, limit=10
    $region2: #{tpu_custom_call.1} parent=1 // loop_pre_header
      _
    $region3: #{tpu_custom_call.1} parent=1 // loop_header
      %s37 = sphi 0, %s41
      %p38 = scmp.ge.s32.totalorder %s37, 10
      %s44 = sphi 0, %s56
      %s45 = sphi 0, %s52
      %s46 = sphi 0, %s44
      %s47 = sphi 0, %s45
      %s48 = sphi 0, %s46
      %s49 = sphi 0, %s47
      %s61 = sphi 0, %s63
      %s64 = sphi 0, %s61
      %s65 = sphi 0, %s64
      %s81 = sphi 0, %s65
      %s89 = sphi 0, %s91
      %s92 = sphi 0, %s89
      %s93 = sphi 0, %s92
      %s109 = sphi 0, %s93
      %s115 = sphi 0, %s117
      %s118 = sphi 0, %s115
      %s119 = sphi 0, %s118
      %s135 = sphi 0, %s119
      %s139 = sphi 0, %s139
      %s141 = sphi 0, %s139
      %s142 = sphi 0, %s141
      %s156 = sphi 0, %s142
      %s160 = sphi 0, %s160
      %s162 = sphi 0, %s160
      %s163 = sphi 0, %s162
      %s177 = sphi 0, %s163
      %s181 = sphi 0, %s181
      %s183 = sphi 0, %s181
      %s184 = sphi 0, %s183
      %s198 = sphi 0, %s184
      %s202 = sphi 0, %s202
      %s204 = sphi 0, %s202
      %s205 = sphi 0, %s204
      %s219 = sphi 0, %s205
      %s223 = sphi 0, %s223
      %s225 = sphi 0, %s223
      %s226 = sphi 0, %s225
      %s240 = sphi 0, %s226
      %s244 = sphi 0, %s244
      %s246 = sphi 0, %s244
      %s247 = sphi 0, %s246
      %s261 = sphi 0, %s247
      %s269 = sphi 0, %s271
      %s272 = sphi 0, %s269
      %s273 = sphi 0, %s272
      %s289 = sphi 0, %s273
      %s297 = sphi 0, %s299
      %s300 = sphi 0, %s297
      %s301 = sphi 0, %s300
      %s317 = sphi 0, %s301
      %s325 = sphi 0, %s327
      %s328 = sphi 0, %s325
      %s329 = sphi 0, %s328
      %s345 = sphi 0, %s329
      %s353 = sphi 0, %s355
      %s356 = sphi 0, %s353
      %s357 = sphi 0, %s356
      %s373 = sphi 0, %s357
    $region4: #{tpu_custom_call.1} parent=1 // loop_header_branch
      %40 = sbr.rel (%p38) target = $region8
    $region5: #{tpu_custom_call.1} parent=1 // loop_body
      %s42 = ssub.s32 %s37, 1
      %s43 = ssub.s32 %s37, 2
      %s50 = sadd.s32 1, %s45
      %p51 = scmp.ge.s32.totalorder %s50, 4
      %s52 = scalar_select %p51, 0, %s50
      %s53 = sadd.s32 1, %s44
      %s54 = scalar_select %p51, %s53, %s44
      %p55 = scmp.ge.s32.totalorder %s54, 2
      %s56 = scalar_select %p55, 0, %s54
      %s57 = ssub.s32 %s44, %s56
      %s58 = ssub.s32 %s45, %s52
      %s59 = sor.u32 %s57, %s58
      %p60 = scmp.eq.s32.totalorder %s59, 0
      %s62 = sadd.s32 %s61, 1
      %s63 = scalar_select %p60, %s61, %s62
      %p66 = pneg %p60
      %p67 = scmp.eq.s32.totalorder %s37, 7
      %p68 = por %p66, %p67
      %p69 = scmp.ne.s32.totalorder %s61, %s64
      %p70 = scmp.eq.s32.totalorder %s37, 0
      %p71 = por %p69, %p70
      %p72 = scmp.ne.s32.totalorder %s61, %s64
      %p73 = scmp.eq.s32.totalorder %s42, 7
      %p74 = por %p72, %p73
      %p75 = scmp.ne.s32.totalorder %s64, %s65
      %p76 = scmp.eq.s32.totalorder %s42, 0
      %p77 = por %p75, %p76
      %p78 = scmp.ne.s32.totalorder %s64, %s65
      %p79 = scmp.eq.s32.totalorder %s43, 7
      %p80 = por %p78, %p79
      %p82 = scmp.ne.s32.totalorder %s65, %s81
      %p83 = scmp.eq.s32.totalorder %s43, 0
      %p84 = por %p82, %p83
      %s85 = ssub.s32 %s44, %s56
      %s86 = ssub.s32 %s45, %s52
      %s87 = sor.u32 %s85, %s86
      %p88 = scmp.eq.s32.totalorder %s87, 0
      %s90 = sadd.s32 %s89, 1
      %s91 = scalar_select %p88, %s89, %s90
      %p94 = pneg %p88
      %p95 = scmp.eq.s32.totalorder %s37, 7
      %p96 = por %p94, %p95
      %p97 = scmp.ne.s32.totalorder %s89, %s92
      %p98 = scmp.eq.s32.totalorder %s37, 0
      %p99 = por %p97, %p98
      %p100 = scmp.ne.s32.totalorder %s89, %s92
      %p101 = scmp.eq.s32.totalorder %s42, 7
      %p102 = por %p100, %p101
      %p103 = scmp.ne.s32.totalorder %s92, %s93
      %p104 = scmp.eq.s32.totalorder %s42, 0
      %p105 = por %p103, %p104
      %p106 = scmp.ne.s32.totalorder %s92, %s93
      %p107 = scmp.eq.s32.totalorder %s43, 7
      %p108 = por %p106, %p107
      %p110 = scmp.ne.s32.totalorder %s93, %s109
      %p111 = scmp.eq.s32.totalorder %s43, 0
      %p112 = por %p110, %p111
      %s113 = ssub.s32 %s44, %s56
      %p114 = scmp.eq.s32.totalorder %s113, 0
      %s116 = sadd.s32 %s115, 1
      %s117 = scalar_select %p114, %s115, %s116
      %p120 = pneg %p114
      %p121 = scmp.eq.s32.totalorder %s37, 7
      %p122 = por %p120, %p121
      %p123 = scmp.ne.s32.totalorder %s115, %s118
      %p124 = scmp.eq.s32.totalorder %s37, 0
      %p125 = por %p123, %p124
      %p126 = scmp.ne.s32.totalorder %s115, %s118
      %p127 = scmp.eq.s32.totalorder %s42, 7
      %p128 = por %p126, %p127
      %p129 = scmp.ne.s32.totalorder %s118, %s119
      %p130 = scmp.eq.s32.totalorder %s42, 0
      %p131 = por %p129, %p130
      %p132 = scmp.ne.s32.totalorder %s118, %s119
      %p133 = scmp.eq.s32.totalorder %s43, 7
      %p134 = por %p132, %p133
      %p136 = scmp.ne.s32.totalorder %s119, %s135
      %p137 = scmp.eq.s32.totalorder %s43, 0
      %p138 = por %p136, %p137
      %s140 = sadd.s32 %s139, 1
      %p143 = scmp.eq.s32.totalorder %s37, 7
      %p144 = scmp.ne.s32.totalorder %s139, %s141
      %p145 = scmp.eq.s32.totalorder %s37, 0
      %p146 = por %p144, %p145
      %p147 = scmp.ne.s32.totalorder %s139, %s141
      %p148 = scmp.eq.s32.totalorder %s42, 7
      %p149 = por %p147, %p148
      %p150 = scmp.ne.s32.totalorder %s141, %s142
      %p151 = scmp.eq.s32.totalorder %s42, 0
      %p152 = por %p150, %p151
      %p153 = scmp.ne.s32.totalorder %s141, %s142
      %p154 = scmp.eq.s32.totalorder %s43, 7
      %p155 = por %p153, %p154
      %p157 = scmp.ne.s32.totalorder %s142, %s156
      %p158 = scmp.eq.s32.totalorder %s43, 0
      %p159 = por %p157, %p158
      %s161 = sadd.s32 %s160, 1
      %p164 = scmp.eq.s32.totalorder %s37, 7
      %p165 = scmp.ne.s32.totalorder %s160, %s162
      %p166 = scmp.eq.s32.totalorder %s37, 0
      %p167 = por %p165, %p166
      %p168 = scmp.ne.s32.totalorder %s160, %s162
      %p169 = scmp.eq.s32.totalorder %s42, 7
      %p170 = por %p168, %p169
      %p171 = scmp.ne.s32.totalorder %s162, %s163
      %p172 = scmp.eq.s32.totalorder %s42, 0
      %p173 = por %p171, %p172
      %p174 = scmp.ne.s32.totalorder %s162, %s163
      %p175 = scmp.eq.s32.totalorder %s43, 7
      %p176 = por %p174, %p175
      %p178 = scmp.ne.s32.totalorder %s163, %s177
      %p179 = scmp.eq.s32.totalorder %s43, 0
      %p180 = por %p178, %p179
      %s182 = sadd.s32 %s181, 1
      %p185 = scmp.eq.s32.totalorder %s37, 7
      %p186 = scmp.ne.s32.totalorder %s181, %s183
      %p187 = scmp.eq.s32.totalorder %s37, 0
      %p188 = por %p186, %p187
      %p189 = scmp.ne.s32.totalorder %s181, %s183
      %p190 = scmp.eq.s32.totalorder %s42, 7
      %p191 = por %p189, %p190
      %p192 = scmp.ne.s32.totalorder %s183, %s184
      %p193 = scmp.eq.s32.totalorder %s42, 0
      %p194 = por %p192, %p193
      %p195 = scmp.ne.s32.totalorder %s183, %s184
      %p196 = scmp.eq.s32.totalorder %s43, 7
      %p197 = por %p195, %p196
      %p199 = scmp.ne.s32.totalorder %s184, %s198
      %p200 = scmp.eq.s32.totalorder %s43, 0
      %p201 = por %p199, %p200
      %s203 = sadd.s32 %s202, 1
      %p206 = scmp.eq.s32.totalorder %s37, 7
      %p207 = scmp.ne.s32.totalorder %s202, %s204
      %p208 = scmp.eq.s32.totalorder %s37, 0
      %p209 = por %p207, %p208
      %p210 = scmp.ne.s32.totalorder %s202, %s204
      %p211 = scmp.eq.s32.totalorder %s42, 7
      %p212 = por %p210, %p211
      %p213 = scmp.ne.s32.totalorder %s204, %s205
      %p214 = scmp.eq.s32.totalorder %s42, 0
      %p215 = por %p213, %p214
      %p216 = scmp.ne.s32.totalorder %s204, %s205
      %p217 = scmp.eq.s32.totalorder %s43, 7
      %p218 = por %p216, %p217
      %p220 = scmp.ne.s32.totalorder %s205, %s219
      %p221 = scmp.eq.s32.totalorder %s43, 0
      %p222 = por %p220, %p221
      %s224 = sadd.s32 %s223, 1
      %p227 = scmp.eq.s32.totalorder %s37, 7
      %p228 = scmp.ne.s32.totalorder %s223, %s225
      %p229 = scmp.eq.s32.totalorder %s37, 0
      %p230 = por %p228, %p229
      %p231 = scmp.ne.s32.totalorder %s223, %s225
      %p232 = scmp.eq.s32.totalorder %s42, 7
      %p233 = por %p231, %p232
      %p234 = scmp.ne.s32.totalorder %s225, %s226
      %p235 = scmp.eq.s32.totalorder %s42, 0
      %p236 = por %p234, %p235
      %p237 = scmp.ne.s32.totalorder %s225, %s226
      %p238 = scmp.eq.s32.totalorder %s43, 7
      %p239 = por %p237, %p238
      %p241 = scmp.ne.s32.totalorder %s226, %s240
      %p242 = scmp.eq.s32.totalorder %s43, 0
      %p243 = por %p241, %p242
      %s245 = sadd.s32 %s244, 1
      %p248 = scmp.eq.s32.totalorder %s37, 7
      %p249 = scmp.ne.s32.totalorder %s244, %s246
      %p250 = scmp.eq.s32.totalorder %s37, 0
      %p251 = por %p249, %p250
      %p252 = scmp.ne.s32.totalorder %s244, %s246
      %p253 = scmp.eq.s32.totalorder %s42, 7
      %p254 = por %p252, %p253
      %p255 = scmp.ne.s32.totalorder %s246, %s247
      %p256 = scmp.eq.s32.totalorder %s42, 0
      %p257 = por %p255, %p256
      %p258 = scmp.ne.s32.totalorder %s246, %s247
      %p259 = scmp.eq.s32.totalorder %s43, 7
      %p260 = por %p258, %p259
      %p262 = scmp.ne.s32.totalorder %s247, %s261
      %p263 = scmp.eq.s32.totalorder %s43, 0
      %p264 = por %p262, %p263
      %s265 = ssub.s32 %s44, %s56
      %s266 = ssub.s32 %s45, %s52
      %s267 = sor.u32 %s265, %s266
      %p268 = scmp.eq.s32.totalorder %s267, 0
      %s270 = sadd.s32 %s269, 1
      %s271 = scalar_select %p268, %s269, %s270
      %p274 = pneg %p268
      %p275 = scmp.eq.s32.totalorder %s37, 7
      %p276 = por %p274, %p275
      %p277 = scmp.ne.s32.totalorder %s269, %s272
      %p278 = scmp.eq.s32.totalorder %s37, 0
      %p279 = por %p277, %p278
      %p280 = scmp.ne.s32.totalorder %s269, %s272
      %p281 = scmp.eq.s32.totalorder %s42, 7
      %p282 = por %p280, %p281
      %p283 = scmp.ne.s32.totalorder %s272, %s273
      %p284 = scmp.eq.s32.totalorder %s42, 0
      %p285 = por %p283, %p284
      %p286 = scmp.ne.s32.totalorder %s272, %s273
      %p287 = scmp.eq.s32.totalorder %s43, 7
      %p288 = por %p286, %p287
      %p290 = scmp.ne.s32.totalorder %s273, %s289
      %p291 = scmp.eq.s32.totalorder %s43, 0
      %p292 = por %p290, %p291
      %s293 = ssub.s32 %s44, %s56
      %s294 = ssub.s32 %s45, %s52
      %s295 = sor.u32 %s293, %s294
      %p296 = scmp.eq.s32.totalorder %s295, 0
      %s298 = sadd.s32 %s297, 1
      %s299 = scalar_select %p296, %s297, %s298
      %p302 = pneg %p296
      %p303 = scmp.eq.s32.totalorder %s37, 7
      %p304 = por %p302, %p303
      %p305 = scmp.ne.s32.totalorder %s297, %s300
      %p306 = scmp.eq.s32.totalorder %s37, 0
      %p307 = por %p305, %p306
      %p308 = scmp.ne.s32.totalorder %s297, %s300
      %p309 = scmp.eq.s32.totalorder %s42, 7
      %p310 = por %p308, %p309
      %p311 = scmp.ne.s32.totalorder %s300, %s301
      %p312 = scmp.eq.s32.totalorder %s42, 0
      %p313 = por %p311, %p312
      %p314 = scmp.ne.s32.totalorder %s300, %s301
      %p315 = scmp.eq.s32.totalorder %s43, 7
      %p316 = por %p314, %p315
      %p318 = scmp.ne.s32.totalorder %s301, %s317
      %p319 = scmp.eq.s32.totalorder %s43, 0
      %p320 = por %p318, %p319
      %s321 = ssub.s32 %s44, %s56
      %s322 = ssub.s32 %s45, %s52
      %s323 = sor.u32 %s321, %s322
      %p324 = scmp.eq.s32.totalorder %s323, 0
      %s326 = sadd.s32 %s325, 1
      %s327 = scalar_select %p324, %s325, %s326
      %p330 = pneg %p324
      %p331 = scmp.eq.s32.totalorder %s37, 7
      %p332 = por %p330, %p331
      %p333 = scmp.ne.s32.totalorder %s325, %s328
      %p334 = scmp.eq.s32.totalorder %s37, 0
      %p335 = por %p333, %p334
      %p336 = scmp.ne.s32.totalorder %s325, %s328
      %p337 = scmp.eq.s32.totalorder %s42, 7
      %p338 = por %p336, %p337
      %p339 = scmp.ne.s32.totalorder %s328, %s329
      %p340 = scmp.eq.s32.totalorder %s42, 0
      %p341 = por %p339, %p340
      %p342 = scmp.ne.s32.totalorder %s328, %s329
      %p343 = scmp.eq.s32.totalorder %s43, 7
      %p344 = por %p342, %p343
      %p346 = scmp.ne.s32.totalorder %s329, %s345
      %p347 = scmp.eq.s32.totalorder %s43, 0
      %p348 = por %p346, %p347
      %s349 = ssub.s32 %s44, %s56
      %s350 = ssub.s32 %s45, %s52
      %s351 = sor.u32 %s349, %s350
      %p352 = scmp.eq.s32.totalorder %s351, 0
      %s354 = sadd.s32 %s353, 1
      %s355 = scalar_select %p352, %s353, %s354
      %p358 = pneg %p352
      %p359 = scmp.eq.s32.totalorder %s37, 7
      %p360 = por %p358, %p359
      %p361 = scmp.ne.s32.totalorder %s353, %s356
      %p362 = scmp.eq.s32.totalorder %s37, 0
      %p363 = por %p361, %p362
      %p364 = scmp.ne.s32.totalorder %s353, %s356
      %p365 = scmp.eq.s32.totalorder %s42, 7
      %p366 = por %p364, %p365
      %p367 = scmp.ne.s32.totalorder %s356, %s357
      %p368 = scmp.eq.s32.totalorder %s42, 0
      %p369 = por %p367, %p368
      %p370 = scmp.ne.s32.totalorder %s356, %s357
      %p371 = scmp.eq.s32.totalorder %s43, 7
      %p372 = por %p370, %p371
      %p374 = scmp.ne.s32.totalorder %s357, %s373
      %p375 = scmp.eq.s32.totalorder %s43, 0
      %p376 = por %p374, %p375
      %p377 = scmp.le.s32.totalorder 1, %s37
      %p378 = scmp.lt.s32.totalorder %s37, 9
      %p379 = pnand %p377, %p378
      %p380 = pneg %p379
      // Predicated region
      $region9: #{tpu_custom_call.1} parent=5 // pred_check
        _
      $region10: #{tpu_custom_call.1} parent=5 // pred_check_branch
        %382 = sbr.rel (%p379) target = $region12
      $region11: #{tpu_custom_call.1} parent=5 // pred_region
        %s383 = ssub.s32 %s37, 1
        // Predicated region
        $region13: #{tpu_custom_call.1} parent=11 // pred_check
          %p384 = pneg %p152
        $region14: #{tpu_custom_call.1} parent=11 // pred_check_branch
          %386 = sbr.rel (%p384) target = $region16
        $region15: #{tpu_custom_call.1} parent=11 // pred_region
          %s388 = ssub.s32 1024, 1024
          %389 = vsyncadd [#allocation9], %s388
          %s390 = sshll.u32 [#allocation8], 4
          %s391 = int_to_ptr.vmem [resolvable:$true] %s390
          %396 = dma.hbm_to_vmem [thread:$0]  %s3, 1024, %s391, [#allocation9], 64, 64, 4
        $region16: #{tpu_custom_call.1} parent=11 // pred_fallthru
          _
        // Predicated region
        $region17: #{tpu_custom_call.1} parent=11 // pred_check
          %p397 = pneg %p173
        $region18: #{tpu_custom_call.1} parent=11 // pred_check_branch
          %399 = sbr.rel (%p397) target = $region20
        $region19: #{tpu_custom_call.1} parent=11 // pred_region
          %s401 = ssub.s32 1024, 1024
          %402 = vsyncadd [#allocation9], %s401
          %s403 = sshll.u32 [#allocation10], 4
          %s404 = int_to_ptr.vmem [resolvable:$true] %s403
          %409 = dma.hbm_to_vmem [thread:$0]  %s4, 1024, %s404, [#allocation9], 64, 64, 4
        $region20: #{tpu_custom_call.1} parent=11 // pred_fallthru
          _
        // Predicated region
        $region21: #{tpu_custom_call.1} parent=11 // pred_check
          %p410 = pneg %p194
        $region22: #{tpu_custom_call.1} parent=11 // pred_check_branch
          %412 = sbr.rel (%p410) target = $region24
        $region23: #{tpu_custom_call.1} parent=11 // pred_region
          %s414 = ssub.s32 16, 16
          %415 = vsyncadd [#allocation12], %s414
          %s417 = sshll.u32 [#allocation11], 4
          %s418 = int_to_ptr.vmem [resolvable:$true] %s417
          %420 = dma.hbm_to_vmem [thread:$0]  %s5, 16, %s418, [#allocation12]
        $region24: #{tpu_custom_call.1} parent=11 // pred_fallthru
          _
        // Predicated region
        $region25: #{tpu_custom_call.1} parent=11 // pred_check
          %p421 = pneg %p215
        $region26: #{tpu_custom_call.1} parent=11 // pred_check_branch
          %423 = sbr.rel (%p421) target = $region28
        $region27: #{tpu_custom_call.1} parent=11 // pred_region
          %s425 = ssub.s32 16, 16
          %426 = vsyncadd [#allocation12], %s425
          %s428 = sshll.u32 [#allocation13], 4
          %s429 = int_to_ptr.vmem [resolvable:$true] %s428
          %431 = dma.hbm_to_vmem [thread:$0]  %s6, 16, %s429, [#allocation12]
        $region28: #{tpu_custom_call.1} parent=11 // pred_fallthru
          _
        // Predicated region
        $region29: #{tpu_custom_call.1} parent=11 // pred_check
          %p432 = pneg %p236
        $region30: #{tpu_custom_call.1} parent=11 // pred_check_branch
          %434 = sbr.rel (%p432) target = $region32
        $region31: #{tpu_custom_call.1} parent=11 // pred_region
          %s436 = ssub.s32 16, 16
          %437 = vsyncadd [#allocation15], %s436
          %s439 = sshll.u32 [#allocation14], 4
          %s440 = int_to_ptr.vmem [resolvable:$true] %s439
          %442 = dma.hbm_to_vmem [thread:$0]  %s7, 16, %s440, [#allocation15]
        $region32: #{tpu_custom_call.1} parent=11 // pred_fallthru
          _
        // Predicated region
        $region33: #{tpu_custom_call.1} parent=11 // pred_check
          %p443 = pneg %p257
        $region34: #{tpu_custom_call.1} parent=11 // pred_check_branch
          %445 = sbr.rel (%p443) target = $region36
        $region35: #{tpu_custom_call.1} parent=11 // pred_region
          %s447 = ssub.s32 16, 16
          %448 = vsyncadd [#allocation15], %s447
          %s450 = sshll.u32 [#allocation16], 4
          %s451 = int_to_ptr.vmem [resolvable:$true] %s450
          %453 = dma.hbm_to_vmem [thread:$0]  %s8, 16, %s451, [#allocation15]
        $region36: #{tpu_custom_call.1} parent=11 // pred_fallthru
          _
      $region12: #{tpu_custom_call.1} parent=5 // pred_fallthru
        _
      %p454 = scmp.lt.s32.totalorder %s37, 8
      // Predicated region
      $region37: #{tpu_custom_call.1} parent=5 // pred_check
        %p455 = pneg %p454
      $region38: #{tpu_custom_call.1} parent=5 // pred_check_branch
        %457 = sbr.rel (%p455) target = $region40
      $region39: #{tpu_custom_call.1} parent=5 // pred_region
        // Predicated region
        $region41: #{tpu_custom_call.1} parent=39 // pred_check
          %p458 = pneg %p71
        $region42: #{tpu_custom_call.1} parent=39 // pred_check_branch
          %460 = sbr.rel (%p458) target = $region44
        $region43: #{tpu_custom_call.1} parent=39 // pred_region
          %s461 = sand.u32 %s61, 1
          %s462 = scalar_lea.sflag [#allocation3], %s461
          %s463 = sand.u32 %s61, 1
          %s464 = smul.addr %s463, 8
          %s465 = scalar_lea.vmem [#allocation2], %s464
          %s467 = ssub.s32 128, 128
          %468 = vsyncadd %s462, %s467
          %s469 = smul.addr %s44, 4
          %s470 = sadd.s32 %s45, %s469
          %s471 = smul.addr %s470, 128
          %s472 = scalar_lea.hbm %s0, %s471
          %s474 = sshll.u32 %s465, 4
          %s475 = int_to_ptr.vmem [resolvable:$true] %s474
          %477 = dma.hbm_to_vmem [thread:$0]  %s472, 128, %s475, %s462
        $region44: #{tpu_custom_call.1} parent=39 // pred_fallthru
          _
        // Predicated region
        $region45: #{tpu_custom_call.1} parent=39 // pred_check
          %p478 = pneg %p99
        $region46: #{tpu_custom_call.1} parent=39 // pred_check_branch
          %480 = sbr.rel (%p478) target = $region48
        $region47: #{tpu_custom_call.1} parent=39 // pred_region
          %s481 = sand.u32 %s37, 1
          %s482 = scalar_lea.sflag [#allocation6], %s481
          %s483 = sand.u32 %s89, 1
          %s484 = smul.addr %s483, 8
          %s485 = scalar_lea.vmem [#allocation5], %s484
          %s487 = ssub.s32 128, 128
          %488 = vsyncadd %s482, %s487
          %s489 = smul.addr %s44, 4
          %s490 = sadd.s32 %s45, %s489
          %s491 = smul.addr %s490, 128
          %s492 = scalar_lea.hbm %s1, %s491
          %s494 = sshll.u32 %s485, 4
          %s495 = int_to_ptr.vmem [resolvable:$true] %s494
          %497 = dma.hbm_to_vmem [thread:$0]  %s492, 128, %s495, %s482
        $region48: #{tpu_custom_call.1} parent=39 // pred_fallthru
          _
        // Predicated region
        $region49: #{tpu_custom_call.1} parent=39 // pred_check
          %p498 = pneg %p125
        $region50: #{tpu_custom_call.1} parent=39 // pred_check_branch
          %500 = sbr.rel (%p498) target = $region52
        $region51: #{tpu_custom_call.1} parent=39 // pred_region
          %s501 = sand.u32 %s37, 1
          %s502 = scalar_lea.sflag [#allocation6], %s501
          %s503 = sand.u32 %s115, 1
          %s504 = scalar_lea.vmem [#allocation7], %s503
          %s506 = ssub.s32 16, 16
          %507 = vsyncadd %s502, %s506
          %s508 = smul.addr %s44, 16
          %s509 = scalar_lea.hbm %s2, %s508
          %s511 = sshll.u32 %s504, 4
          %s512 = int_to_ptr.vmem [resolvable:$true] %s511
          %514 = dma.hbm_to_vmem [thread:$0]  %s509, 16, %s512, %s502
        $region52: #{tpu_custom_call.1} parent=39 // pred_fallthru
          _
      $region40: #{tpu_custom_call.1} parent=5 // pred_fallthru
        _
      %p515 = scmp.le.s32.totalorder 1, %s37
      %p516 = scmp.lt.s32.totalorder %s37, 9
      %p517 = pnand %p515, %p516
      %p518 = pneg %p517
      // Predicated region
      $region53: #{tpu_custom_call.1} parent=5 // pred_check
        _
      $region54: #{tpu_custom_call.1} parent=5 // pred_check_branch
        %520 = sbr.rel (%p517) target = $region56
      $region55: #{tpu_custom_call.1} parent=5 // pred_region
        %s521 = ssub.s32 %s37, 1
        %s522 = sand.u32 %s64, 1
        %s523 = scalar_lea.sflag [#allocation3], %s522
        %s524 = sand.u32 %s64, 1
        %s525 = smul.addr %s524, 8
        %s526 = scalar_lea.vmem [#allocation2], %s525
        // Predicated region
        $region57: #{tpu_custom_call.1} parent=55 // pred_check
          %p527 = pneg %p77
        $region58: #{tpu_custom_call.1} parent=55 // pred_check_branch
          %529 = sbr.rel (%p527) target = $region60
        $region59: #{tpu_custom_call.1} parent=55 // pred_region
          %530 = dma.done %s523, 128
        $region60: #{tpu_custom_call.1} parent=55 // pred_fallthru
          _
        %s531 = sand.u32 %s42, 1
        %s532 = scalar_lea.sflag [#allocation6], %s531
        %s533 = sand.u32 %s92, 1
        %s534 = smul.addr %s533, 8
        %s535 = scalar_lea.vmem [#allocation5], %s534
        // Predicated region
        $region61: #{tpu_custom_call.1} parent=55 // pred_check
          %p536 = pneg %p105
        $region62: #{tpu_custom_call.1} parent=55 // pred_check_branch
          %538 = sbr.rel (%p536) target = $region64
        $region63: #{tpu_custom_call.1} parent=55 // pred_region
          %539 = dma.done %s532, 128
        $region64: #{tpu_custom_call.1} parent=55 // pred_fallthru
          _
        %s540 = sand.u32 %s42, 1
        %s541 = scalar_lea.sflag [#allocation6], %s540
        %s542 = sand.u32 %s118, 1
        %s543 = scalar_lea.vmem [#allocation7], %s542
        // Predicated region
        $region65: #{tpu_custom_call.1} parent=55 // pred_check
          %p544 = pneg %p131
        $region66: #{tpu_custom_call.1} parent=55 // pred_check_branch
          %546 = sbr.rel (%p544) target = $region68
        $region67: #{tpu_custom_call.1} parent=55 // pred_region
          %547 = dma.done %s541, 16
        $region68: #{tpu_custom_call.1} parent=55 // pred_fallthru
          _
        // Predicated region
        $region69: #{tpu_custom_call.1} parent=55 // pred_check
          %p548 = pneg %p152
        $region70: #{tpu_custom_call.1} parent=55 // pred_check_branch
          %550 = sbr.rel (%p548) target = $region72
        $region71: #{tpu_custom_call.1} parent=55 // pred_region
          %551 = dma.done [#allocation9], 1024
        $region72: #{tpu_custom_call.1} parent=55 // pred_fallthru
          _
        // Predicated region
        $region73: #{tpu_custom_call.1} parent=55 // pred_check
          %p552 = pneg %p173
        $region74: #{tpu_custom_call.1} parent=55 // pred_check_branch
          %554 = sbr.rel (%p552) target = $region76
        $region75: #{tpu_custom_call.1} parent=55 // pred_region
          %555 = dma.done [#allocation9], 1024
        $region76: #{tpu_custom_call.1} parent=55 // pred_fallthru
          _
        // Predicated region
        $region77: #{tpu_custom_call.1} parent=55 // pred_check
          %p556 = pneg %p194
        $region78: #{tpu_custom_call.1} parent=55 // pred_check_branch
          %558 = sbr.rel (%p556) target = $region80
        $region79: #{tpu_custom_call.1} parent=55 // pred_region
          %559 = dma.done [#allocation12], 16
        $region80: #{tpu_custom_call.1} parent=55 // pred_fallthru
          _
        // Predicated region
        $region81: #{tpu_custom_call.1} parent=55 // pred_check
          %p560 = pneg %p215
        $region82: #{tpu_custom_call.1} parent=55 // pred_check_branch
          %562 = sbr.rel (%p560) target = $region84
        $region83: #{tpu_custom_call.1} parent=55 // pred_region
          %563 = dma.done [#allocation12], 16
        $region84: #{tpu_custom_call.1} parent=55 // pred_fallthru
          _
        // Predicated region
        $region85: #{tpu_custom_call.1} parent=55 // pred_check
          %p564 = pneg %p236
        $region86: #{tpu_custom_call.1} parent=55 // pred_check_branch
          %566 = sbr.rel (%p564) target = $region88
        $region87: #{tpu_custom_call.1} parent=55 // pred_region
          %567 = dma.done [#allocation15], 16
        $region88: #{tpu_custom_call.1} parent=55 // pred_fallthru
          _
        // Predicated region
        $region89: #{tpu_custom_call.1} parent=55 // pred_check
          %p568 = pneg %p257
        $region90: #{tpu_custom_call.1} parent=55 // pred_check_branch
          %570 = sbr.rel (%p568) target = $region92
        $region91: #{tpu_custom_call.1} parent=55 // pred_region
          %571 = dma.done [#allocation15], 16
        $region92: #{tpu_custom_call.1} parent=55 // pred_fallthru
          _
        %s572 = sand.u32 %s64, 1
        %s573 = scalar_lea.sflag [#allocation3], %s572
        %s574 = sand.u32 %s64, 1
        %s575 = smul.addr %s574, 8
        %s576 = scalar_lea.vmem [#allocation2], %s575
        %p577 = pneg %p77
        %p578 = pneg %p74
        %s579 = sand.u32 %s42, 1
        %s580 = scalar_lea.sflag [#allocation6], %s579
        %s581 = sand.u32 %s92, 1
        %s582 = smul.addr %s581, 8
        %s583 = scalar_lea.vmem [#allocation5], %s582
        %p584 = pneg %p105
        %p585 = pneg %p102
        %s586 = sand.u32 %s42, 1
        %s587 = scalar_lea.sflag [#allocation6], %s586
        %s588 = sand.u32 %s118, 1
        %s589 = scalar_lea.vmem [#allocation7], %s588
        %p590 = pneg %p131
        %p591 = pneg %p128
        %p592 = pneg %p152
        %p593 = pneg %p149
        %p594 = pneg %p173
        %p595 = pneg %p170
        %p596 = pneg %p194
        %p597 = pneg %p191
        %p598 = pneg %p215
        %p599 = pneg %p212
        %p600 = pneg %p236
        %p601 = pneg %p233
        %p602 = pneg %p257
        %p603 = pneg %p254
        %p604 = pneg %p285
        %p605 = pneg %p282
        %s606 = sand.u32 %s272, 1
        %s607 = scalar_lea.sflag [#allocation4], %s606
        %s608 = sand.u32 %s272, 1
        %s609 = smul.addr %s608, 8
        %s610 = scalar_lea.vmem [#allocation17], %s609
        %p611 = pneg %p313
        %p612 = pneg %p310
        %s613 = sand.u32 %s42, 1
        %s614 = scalar_lea.sflag [#allocation19], %s613
        %s615 = sand.u32 %s300, 1
        %s616 = smul.addr %s615, 4
        %s617 = scalar_lea.vmem [#allocation18], %s616
        %p618 = pneg %p341
        %p619 = pneg %p338
        %s620 = sand.u32 %s42, 1
        %s621 = scalar_lea.sflag [#allocation19], %s620
        %s622 = sand.u32 %s328, 1
        %s623 = smul.addr %s622, 4
        %s624 = scalar_lea.vmem [#allocation20], %s623
        %p625 = pneg %p369
        %p626 = pneg %p366
        %s627 = sand.u32 %s356, 1
        %s628 = scalar_lea.sflag [#allocation22], %s627
        %s629 = sand.u32 %s356, 1
        %s630 = smul.addr %s629, 4
        %s631 = scalar_lea.vmem [#allocation21], %s630
        %v633 = vld [vmem:[%s526] sm:$0xff]
        %v634 = vld [vmem:[%s535] sm:$0xff]
        %v635 = vld [vmem:[%s543] sm:$0x1]
        %v636 = vld [vmem:[#allocation11] sm:$0x1]
        %v637 = vld [vmem:[#allocation13] sm:$0x1]
        %638 = vadd.xlane.f32.xlu0 %v633
        %v639 = vpop.xlane.xlu0 %638
        %v640 = vrcp.pop 128.0
        %v641 = vmul.f32 %v639, %v640
        %v642 = vsub.f32 %v633, %v641
        %v643 = vmul.f32 %v642, %v642
        %644 = vadd.xlane.f32.xlu0 %v643
        %v645 = vpop.xlane.xlu0 %644
        %v646 = vmul.f32 %v645, %v640
        %v647 = vadd.f32 %v646, 1e-05
        %v648 = vrsqrt.pop %v647
        %v649 = vmul.f32 %v642, %v648
        %v651 = vlaneseq
        %v652 = vshrl.u32 %v651, 7
        %v653 = vsub.s32 0, %v652
        %v654 = vrot.slane %v636, %v653
        %v656 = vmul.f32 %v649, %v654
        %v658 = vlaneseq
        %v659 = vshrl.u32 %v658, 7
        %v660 = vsub.s32 0, %v659
        %v661 = vrot.slane %v637, %v660
        %v663 = vadd.f32 %v656, %v661
        %v665 = vlaneseq
        %v666 = vshrl.u32 %v665, 7
        %v667 = vsub.s32 0, %v666
        %v668 = vrot.slane %v635, %v667
        %v670 = vsub.f32 %v634, %v668
        %v671 = vld [vmem:[#allocation14] sm:$0x1]
        %v672 = vld [vmem:[#allocation16] sm:$0x1]
        %673 = vadd.xlane.f32.xlu0 %v670
        %v674 = vpop.xlane.xlu0 %673
        %v675 = vmul.f32 %v674, %v640
        %v676 = vsub.f32 %v670, %v675
        %v677 = vmul.f32 %v676, %v676
        %678 = vadd.xlane.f32.xlu0 %v677
        %v679 = vpop.xlane.xlu0 %678
        %v680 = vmul.f32 %v679, %v640
        %v681 = vadd.f32 %v680, 1e-05
        %v682 = vrsqrt.pop %v681
        %v683 = vmul.f32 %v676, %v682
        %v685 = vlaneseq
        %v686 = vshrl.u32 %v685, 7
        %v687 = vsub.s32 0, %v686
        %v688 = vrot.slane %v671, %v687
        %v690 = vmul.f32 %v683, %v688
        %v692 = vlaneseq
        %v693 = vshrl.u32 %v692, 7
        %v694 = vsub.s32 0, %v693
        %v695 = vrot.slane %v672, %v694
        %v697 = vadd.f32 %v690, %v695
        %v698 = vpack.c.bf16 %v663, %v663
        %v699 = vpack.c.bf16 %v697, %v697
        %v700 = vld [vmem:[#allocation8] sm:$0xf]
        %v701 = vld [vmem:[#allocation8 + $0x4] sm:$0xf]
        %v702 = vld [vmem:[#allocation8 + $0x8] sm:$0xf]
        %v703 = vld [vmem:[#allocation8 + $0xc] sm:$0xf]
        %v704 = vld [vmem:[#allocation8 + $0x10] sm:$0xf]
        %v705 = vld [vmem:[#allocation8 + $0x14] sm:$0xf]
        %v706 = vld [vmem:[#allocation8 + $0x18] sm:$0xf]
        %v707 = vld [vmem:[#allocation8 + $0x1c] sm:$0xf]
        %v708 = vld [vmem:[#allocation8 + $0x20] sm:$0xf]
        %v709 = vld [vmem:[#allocation8 + $0x24] sm:$0xf]
        %v710 = vld [vmem:[#allocation8 + $0x28] sm:$0xf]
        %v711 = vld [vmem:[#allocation8 + $0x2c] sm:$0xf]
        %v712 = vld [vmem:[#allocation8 + $0x30] sm:$0xf]
        %v713 = vld [vmem:[#allocation8 + $0x34] sm:$0xf]
        %v714 = vld [vmem:[#allocation8 + $0x38] sm:$0xf]
        %v715 = vld [vmem:[#allocation8 + $0x3c] sm:$0xf]
        %v732 = vunpack.c.l.b16 %v700
        %v733 = vunpack.c.l.b16 %v701
        %v734 = vunpack.c.l.b16 %v702
        %v735 = vunpack.c.l.b16 %v703
        %v736 = vunpack.c.l.b16 %v704
        %v737 = vunpack.c.l.b16 %v705
        %v738 = vunpack.c.l.b16 %v706
        %v739 = vunpack.c.l.b16 %v707
        %v740 = vunpack.c.l.b16 %v708
        %v741 = vunpack.c.l.b16 %v709
        %v742 = vunpack.c.l.b16 %v710
        %v743 = vunpack.c.l.b16 %v711
        %v744 = vunpack.c.l.b16 %v712
        %v745 = vunpack.c.l.b16 %v713
        %v746 = vunpack.c.l.b16 %v714
        %v747 = vunpack.c.l.b16 %v715
        %v748 = vpack.c.b16 %v733, %v732
        %v749 = vpack.c.b16 %v735, %v734
        %v750 = vpack.c.b16 %v737, %v736
        %v751 = vpack.c.b16 %v739, %v738
        %v752 = vpack.c.b16 %v741, %v740
        %v753 = vpack.c.b16 %v743, %v742
        %v754 = vpack.c.b16 %v745, %v744
        %v755 = vpack.c.b16 %v747, %v746
        %764 = vmatprep.subr.bf16.mxu0 0
        %765 = vmatpush1.bf16.msra.mxu0 %v748
        %766 = vmatprep.subr.bf16.mxu0 0
        %767 = vmatpush1.bf16.msra.mxu0 %v749
        %768 = vmatprep.subr.bf16.mxu0 0
        %769 = vmatpush1.bf16.msra.mxu0 %v750
        %770 = vmatprep.subr.bf16.mxu0 0
        %771 = vmatpush1.bf16.msra.mxu0 %v751
        %772 = vmatprep.subr.bf16.mxu0 0
        %773 = vmatpush1.bf16.msra.mxu0 %v752
        %774 = vmatprep.subr.bf16.mxu0 0
        %775 = vmatpush1.bf16.msra.mxu0 %v753
        %776 = vmatprep.subr.bf16.mxu0 0
        %777 = vmatpush1.bf16.msra.mxu0 %v754
        %778 = vmatprep.subr.bf16.mxu0 0
        %779 = vmatpush1.bf16.msra.mxu0 %v755
        %780 = vmatprep.subr.bf16.mxu0 0
        %781 = vmatpush1.bf16.msra.mxu0 0
        %782 = vmatprep.subr.bf16.mxu0 0
        %783 = vmatpush1.bf16.msra.mxu0 0
        %784 = vmatprep.subr.bf16.mxu0 0
        %785 = vmatpush1.bf16.msra.mxu0 0
        %786 = vmatprep.subr.bf16.mxu0 0
        %787 = vmatpush1.bf16.msra.mxu0 0
        %788 = vmatprep.subr.bf16.mxu0 0
        %789 = vmatpush1.bf16.msra.mxu0 0
        %790 = vmatprep.subr.bf16.mxu0 0
        %791 = vmatpush1.bf16.msra.mxu0 0
        %792 = vmatprep.subr.bf16.mxu0 0
        %793 = vmatpush1.bf16.msra.mxu0 0
        %794 = vmatprep.subr.bf16.mxu0 0
        %795 = vmatpush1.bf16.msra.mxu0 0
        %796 = vmatprep.mubr.bf16.mxu0 0
        %797 = vmatmul.mubr.bf16.gmra.mrb[0].mxu0 %v698
        %v798 = vpop.f32.mrb[0].mxu0
        %v799 = vadd.f32 0.0, %v798
        %v800 = vpop.f32.mrb[0].mxu0
        %v801 = vpop.f32.mrb[0].mxu0
        %v802 = vpop.f32.mrb[0].mxu0
        %803 = vdwg.mxu0
        %v804 = vld [vmem:[#allocation10] sm:$0xf]
        %v805 = vld [vmem:[#allocation10 + $0x4] sm:$0xf]
        %v806 = vld [vmem:[#allocation10 + $0x8] sm:$0xf]
        %v807 = vld [vmem:[#allocation10 + $0xc] sm:$0xf]
        %v808 = vld [vmem:[#allocation10 + $0x10] sm:$0xf]
        %v809 = vld [vmem:[#allocation10 + $0x14] sm:$0xf]
        %v810 = vld [vmem:[#allocation10 + $0x18] sm:$0xf]
        %v811 = vld [vmem:[#allocation10 + $0x1c] sm:$0xf]
        %v812 = vld [vmem:[#allocation10 + $0x20] sm:$0xf]
        %v813 = vld [vmem:[#allocation10 + $0x24] sm:$0xf]
        %v814 = vld [vmem:[#allocation10 + $0x28] sm:$0xf]
        %v815 = vld [vmem:[#allocation10 + $0x2c] sm:$0xf]
        %v816 = vld [vmem:[#allocation10 + $0x30] sm:$0xf]
        %v817 = vld [vmem:[#allocation10 + $0x34] sm:$0xf]
        %v818 = vld [vmem:[#allocation10 + $0x38] sm:$0xf]
        %v819 = vld [vmem:[#allocation10 + $0x3c] sm:$0xf]
        %v836 = vunpack.c.l.b16 %v804
        %v837 = vunpack.c.l.b16 %v805
        %v838 = vunpack.c.l.b16 %v806
        %v839 = vunpack.c.l.b16 %v807
        %v840 = vunpack.c.l.b16 %v808
        %v841 = vunpack.c.l.b16 %v809
        %v842 = vunpack.c.l.b16 %v810
        %v843 = vunpack.c.l.b16 %v811
        %v844 = vunpack.c.l.b16 %v812
        %v845 = vunpack.c.l.b16 %v813
        %v846 = vunpack.c.l.b16 %v814
        %v847 = vunpack.c.l.b16 %v815
        %v848 = vunpack.c.l.b16 %v816
        %v849 = vunpack.c.l.b16 %v817
        %v850 = vunpack.c.l.b16 %v818
        %v851 = vunpack.c.l.b16 %v819
        %v852 = vpack.c.b16 %v837, %v836
        %v853 = vpack.c.b16 %v839, %v838
        %v854 = vpack.c.b16 %v841, %v840
        %v855 = vpack.c.b16 %v843, %v842
        %v856 = vpack.c.b16 %v845, %v844
        %v857 = vpack.c.b16 %v847, %v846
        %v858 = vpack.c.b16 %v849, %v848
        %v859 = vpack.c.b16 %v851, %v850
        %868 = vmatprep.subr.bf16.mxu0 0
        %869 = vmatpush1.bf16.msra.mxu0 %v852
        %870 = vmatprep.subr.bf16.mxu0 0
        %871 = vmatpush1.bf16.msra.mxu0 %v853
        %872 = vmatprep.subr.bf16.mxu0 0
        %873 = vmatpush1.bf16.msra.mxu0 %v854
        %874 = vmatprep.subr.bf16.mxu0 0
        %875 = vmatpush1.bf16.msra.mxu0 %v855
        %876 = vmatprep.subr.bf16.mxu0 0
        %877 = vmatpush1.bf16.msra.mxu0 %v856
        %878 = vmatprep.subr.bf16.mxu0 0
        %879 = vmatpush1.bf16.msra.mxu0 %v857
        %880 = vmatprep.subr.bf16.mxu0 0
        %881 = vmatpush1.bf16.msra.mxu0 %v858
        %882 = vmatprep.subr.bf16.mxu0 0
        %883 = vmatpush1.bf16.msra.mxu0 %v859
        %884 = vmatprep.subr.bf16.mxu0 0
        %885 = vmatpush1.bf16.msra.mxu0 0
        %886 = vmatprep.subr.bf16.mxu0 0
        %887 = vmatpush1.bf16.msra.mxu0 0
        %888 = vmatprep.subr.bf16.mxu0 0
        %889 = vmatpush1.bf16.msra.mxu0 0
        %890 = vmatprep.subr.bf16.mxu0 0
        %891 = vmatpush1.bf16.msra.mxu0 0
        %892 = vmatprep.subr.bf16.mxu0 0
        %893 = vmatpush1.bf16.msra.mxu0 0
        %894 = vmatprep.subr.bf16.mxu0 0
        %895 = vmatpush1.bf16.msra.mxu0 0
        %896 = vmatprep.subr.bf16.mxu0 0
        %897 = vmatpush1.bf16.msra.mxu0 0
        %898 = vmatprep.subr.bf16.mxu0 0
        %899 = vmatpush1.bf16.msra.mxu0 0
        %900 = vmatprep.mubr.bf16.mxu0 0
        %901 = vmatmul.mubr.bf16.gmra.mrb[0].mxu0 %v699
        %v902 = vpop.f32.mrb[0].mxu0
        %v903 = vadd.f32 0.0, %v902
        %v904 = vpop.f32.mrb[0].mxu0
        %v905 = vpop.f32.mrb[0].mxu0
        %v906 = vpop.f32.mrb[0].mxu0
        %907 = vdwg.mxu0
        %908 = vst [vmem:[%s610] sm:$0xff] %v663
        %909 = vst [vmem:[%s624] sm:$0xf] %v699
        %v910 = vpack.c.bf16 %v799, %v799
        %911 = vst [vmem:[%s617] sm:$0xf] %v910
        %v912 = vpack.c.bf16 %v903, %v903
        %913 = vst [vmem:[%s631] sm:$0xf] %v912
        %s914 = sand.u32 %s272, 1
        %s915 = scalar_lea.sflag [#allocation4], %s914
        %s916 = sand.u32 %s272, 1
        %s917 = smul.addr %s916, 8
        %s918 = scalar_lea.vmem [#allocation17], %s917
        %s919 = sand.u32 %s42, 1
        %s920 = scalar_lea.sflag [#allocation19], %s919
        %s921 = sand.u32 %s300, 1
        %s922 = smul.addr %s921, 4
        %s923 = scalar_lea.vmem [#allocation18], %s922
        %s924 = sand.u32 %s42, 1
        %s925 = scalar_lea.sflag [#allocation19], %s924
        %s926 = sand.u32 %s328, 1
        %s927 = smul.addr %s926, 4
        %s928 = scalar_lea.vmem [#allocation20], %s927
        %s929 = sand.u32 %s356, 1
        %s930 = scalar_lea.sflag [#allocation22], %s929
        %s931 = sand.u32 %s356, 1
        %s932 = smul.addr %s931, 4
        %s933 = scalar_lea.vmem [#allocation21], %s932
        // Predicated region
        $region93: #{tpu_custom_call.1} parent=55 // pred_check
          %p934 = pneg %p282
        $region94: #{tpu_custom_call.1} parent=55 // pred_check_branch
          %936 = sbr.rel (%p934) target = $region96
        $region95: #{tpu_custom_call.1} parent=55 // pred_region
          %s938 = ssub.s32 128, 128
          %939 = vsyncadd %s915, %s938
          %s940 = smul.addr %s46, 4
          %s941 = sadd.s32 %s47, %s940
          %s942 = smul.addr %s941, 128
          %s943 = scalar_lea.hbm %s9, %s942
          %s945 = sshll.u32 %s918, 4
          %s946 = int_to_ptr.vmem [resolvable:$true] %s945
          %948 = dma.vmem_to_hbm [thread:$0]  %s946, 128, %s943, %s915
        $region96: #{tpu_custom_call.1} parent=55 // pred_fallthru
          _
        // Predicated region
        $region97: #{tpu_custom_call.1} parent=55 // pred_check
          %p949 = pneg %p310
        $region98: #{tpu_custom_call.1} parent=55 // pred_check_branch
          %951 = sbr.rel (%p949) target = $region100
        $region99: #{tpu_custom_call.1} parent=55 // pred_region
          %s953 = ssub.s32 64, 64
          %954 = vsyncadd %s920, %s953
          %s955 = smul.addr %s46, 4
          %s956 = sadd.s32 %s47, %s955
          %s957 = smul.addr %s956, 64
          %s958 = scalar_lea.hbm %s10, %s957
          %s960 = sshll.u32 %s923, 4
          %s961 = int_to_ptr.vmem [resolvable:$true] %s960
          %963 = dma.vmem_to_hbm [thread:$0]  %s961, 64, %s958, %s920
        $region100: #{tpu_custom_call.1} parent=55 // pred_fallthru
          _
        // Predicated region
        $region101: #{tpu_custom_call.1} parent=55 // pred_check
          %p964 = pneg %p338
        $region102: #{tpu_custom_call.1} parent=55 // pred_check_branch
          %966 = sbr.rel (%p964) target = $region104
        $region103: #{tpu_custom_call.1} parent=55 // pred_region
          %s968 = ssub.s32 64, 64
          %969 = vsyncadd %s925, %s968
          %s970 = smul.addr %s46, 4
          %s971 = sadd.s32 %s47, %s970
          %s972 = smul.addr %s971, 64
          %s973 = scalar_lea.hbm %s11, %s972
          %s975 = sshll.u32 %s928, 4
          %s976 = int_to_ptr.vmem [resolvable:$true] %s975
          %978 = dma.vmem_to_hbm [thread:$0]  %s976, 64, %s973, %s925
        $region104: #{tpu_custom_call.1} parent=55 // pred_fallthru
          _
        // Predicated region
        $region105: #{tpu_custom_call.1} parent=55 // pred_check
          %p979 = pneg %p366
        $region106: #{tpu_custom_call.1} parent=55 // pred_check_branch
          %981 = sbr.rel (%p979) target = $region108
        $region107: #{tpu_custom_call.1} parent=55 // pred_region
          %s983 = ssub.s32 64, 64
          %984 = vsyncadd %s930, %s983
          %s985 = smul.addr %s46, 4
          %s986 = sadd.s32 %s47, %s985
          %s987 = smul.addr %s986, 64
          %s988 = scalar_lea.hbm %s12, %s987
          %s990 = sshll.u32 %s933, 4
          %s991 = int_to_ptr.vmem [resolvable:$true] %s990
          %993 = dma.vmem_to_hbm [thread:$0]  %s991, 64, %s988, %s930
        $region108: #{tpu_custom_call.1} parent=55 // pred_fallthru
          _
      $region56: #{tpu_custom_call.1} parent=5 // pred_fallthru
        _
      %p994 = scmp.le.s32.totalorder 2, %s37
      // Predicated region
      $region109: #{tpu_custom_call.1} parent=5 // pred_check
        %p995 = pneg %p994
      $region110: #{tpu_custom_call.1} parent=5 // pred_check_branch
        %997 = sbr.rel (%p995) target = $region112
      $region111: #{tpu_custom_call.1} parent=5 // pred_region
        %s998 = ssub.s32 %s37, 2
        // Predicated region
        $region113: #{tpu_custom_call.1} parent=111 // pred_check
          %p999 = pneg %p288
        $region114: #{tpu_custom_call.1} parent=111 // pred_check_branch
          %1001 = sbr.rel (%p999) target = $region116
        $region115: #{tpu_custom_call.1} parent=111 // pred_region
          %s1002 = sand.u32 %s273, 1
          %s1003 = scalar_lea.sflag [#allocation4], %s1002
          %s1004 = sand.u32 %s273, 1
          %s1005 = smul.addr %s1004, 8
          %s1006 = scalar_lea.vmem [#allocation17], %s1005
          %1007 = dma.done %s1003, 128
        $region116: #{tpu_custom_call.1} parent=111 // pred_fallthru
          _
        // Predicated region
        $region117: #{tpu_custom_call.1} parent=111 // pred_check
          %p1008 = pneg %p316
        $region118: #{tpu_custom_call.1} parent=111 // pred_check_branch
          %1010 = sbr.rel (%p1008) target = $region120
        $region119: #{tpu_custom_call.1} parent=111 // pred_region
          %s1011 = sand.u32 %s43, 1
          %s1012 = scalar_lea.sflag [#allocation19], %s1011
          %s1013 = sand.u32 %s301, 1
          %s1014 = smul.addr %s1013, 4
          %s1015 = scalar_lea.vmem [#allocation18], %s1014
          %1016 = dma.done %s1012, 64
        $region120: #{tpu_custom_call.1} parent=111 // pred_fallthru
          _
        // Predicated region
        $region121: #{tpu_custom_call.1} parent=111 // pred_check
          %p1017 = pneg %p344
        $region122: #{tpu_custom_call.1} parent=111 // pred_check_branch
          %1019 = sbr.rel (%p1017) target = $region124
        $region123: #{tpu_custom_call.1} parent=111 // pred_region
          %s1020 = sand.u32 %s43, 1
          %s1021 = scalar_lea.sflag [#allocation19], %s1020
          %s1022 = sand.u32 %s329, 1
          %s1023 = smul.addr %s1022, 4
          %s1024 = scalar_lea.vmem [#allocation20], %s1023
          %1025 = dma.done %s1021, 64
        $region124: #{tpu_custom_call.1} parent=111 // pred_fallthru
          _
        // Predicated region
        $region125: #{tpu_custom_call.1} parent=111 // pred_check
          %p1026 = pneg %p372
        $region126: #{tpu_custom_call.1} parent=111 // pred_check_branch
          %1028 = sbr.rel (%p1026) target = $region128
        $region127: #{tpu_custom_call.1} parent=111 // pred_region
          %s1029 = sand.u32 %s357, 1
          %s1030 = scalar_lea.sflag [#allocation22], %s1029
          %s1031 = sand.u32 %s357, 1
          %s1032 = smul.addr %s1031, 4
          %s1033 = scalar_lea.vmem [#allocation21], %s1032
          %1034 = dma.done %s1030, 64
        $region128: #{tpu_custom_call.1} parent=111 // pred_fallthru
          _
      $region112: #{tpu_custom_call.1} parent=5 // pred_fallthru
        _
    $region6: #{tpu_custom_call.1} parent=1 // loop_footer
      %s41 = sadd.s32 1, %s37
    $region7: #{tpu_custom_call.1} parent=1 // loop_footer_branch
      %36 = sbr.rel target = $region3
    $region8: #{tpu_custom_call.1} parent=1 // loop_exit
      _
    %1035 = vsyncpa [#allocation3], 1
    %s1036 = scalar_lea.sflag [#allocation3], 1
    %1037 = vsyncpa %s1036, 1
    %1038 = vsyncpa [#allocation6], 1
    %s1039 = scalar_lea.sflag [#allocation6], 1
    %1040 = vsyncpa %s1039, 1
    %1041 = vsyncpa [#allocation9], 1
    %1042 = vsyncpa [#allocation12], 1
    %1043 = vsyncpa [#allocation15], 1
    %1044 = vsyncpa [#allocation4], 1
    %s1045 = scalar_lea.sflag [#allocation4], 1
    %1046 = vsyncpa %s1045, 1
    %1047 = vsyncpa [#allocation19], 1
    %s1048 = scalar_lea.sflag [#allocation19], 1
    %1049 = vsyncpa %s1048, 1
    %1050 = vsyncpa [#allocation22], 1
    %s1051 = scalar_lea.sflag [#allocation22], 1
    %1052 = vsyncpa %s1051, 1

</llo_original>
